<compile_context>
chip_gen: v5e
topology: v5e:2x2
jax: 0.10.0
libtpu: 0.0.40
codegen_flags: <defaults>
</compile_context>

<pallas_src>
import jax
import jax.numpy as jnp
from jax.experimental import pallas as pl
from jax.experimental.pallas import tpu as pltpu

_LANE = 128
_SUBLANE = 8
_DEFAULT_TILE_B = 256  # amortizes ~0.35 us/step pipeline overhead


def _round_up(x, m):
    return (x + m - 1) // m * m


# ----------------------------- Pallas kernels ------------------------------

def _decoder_kernel(x_ref, w1_ref, b1_ref, w2_ref, b2_ref, o_ref):
    # Linear -> ReLU -> Linear, fused; f32 accumulation on the MXU.
    h = jnp.dot(x_ref[...], w1_ref[...], preferred_element_type=jnp.float32)
    h = jnp.maximum(h + b1_ref[...], 0.0)                      # fused bias+ReLU (f32)
    y = jnp.dot(h.astype(w2_ref.dtype), w2_ref[...],
                preferred_element_type=jnp.float32)
    o_ref[...] = (y + b2_ref[...]).astype(o_ref.dtype)


def _long_decoder_kernel(x_ref, w1_ref, b1_ref, w2_ref, b2_ref,
                         w3_ref, b3_ref, o_ref):
    # Linear -> ReLU -> Linear -> ReLU -> Linear, fused.
    h = jnp.dot(x_ref[...], w1_ref[...], preferred_element_type=jnp.float32)
    h = jnp.maximum(h + b1_ref[...], 0.0)
    h = jnp.dot(h.astype(w2_ref.dtype), w2_ref[...],
                preferred_element_type=jnp.float32)
    h = jnp.maximum(h + b2_ref[...], 0.0)
    y = jnp.dot(h.astype(w3_ref.dtype), w3_ref[...],
                preferred_element_type=jnp.float32)
    o_ref[...] = (y + b3_ref[...]).astype(o_ref.dtype)


# ----------------------------- fused MLP driver -----------------------------

def _fused_mlp(x, layers, out_padded, *, tile_b=_DEFAULT_TILE_B):
    """layers: list of (W[in,out], b[1,out]); last layer is lane-padded to out_padded."""
    B, d_in = x.shape
    # Tile the batch; keep sublane-aligned tiles and pad B up to a multiple.
    tile_b = min(tile_b, _round_up(max(B, 1), _SUBLANE))
    B_pad = _round_up(B, tile_b)
    if B_pad != B:
        x = jnp.pad(x, ((0, B_pad - B), (0, 0)))
    grid = (B_pad // tile_b,)

    flat_params = []
    in_specs = [pl.BlockSpec((tile_b, d_in), lambda i: (i, 0))]      # batch-tiled
    for w, b in layers:
        flat_params += [w, b]
        # Weights / biases: constant block index -> stay resident, DMA'd once.
        in_specs.append(pl.BlockSpec(w.shape, lambda i: (0, 0)))
        in_specs.append(pl.BlockSpec(b.shape, lambda i: (0, 0)))

    kernel = _decoder_kernel if len(layers) == 2 else _long_decoder_kernel

    # Advisory cost estimate for the XLA scheduler.
    itemsize = jnp.dtype(x.dtype).itemsize
    flops = sum(2 * B_pad * w.shape[0] * w.shape[1] for w, _ in layers)
    bytes_accessed = x.size * itemsize + B_pad * out_padded * 4
    bytes_accessed += sum((w.size + b.size) * jnp.dtype(w.dtype).itemsize
                          for w, b in layers)

    out = pl.pallas_call(
        kernel,
        out_shape=jax.ShapeDtypeStruct((B_pad, out_padded), jnp.float32),
        grid=grid,
        in_specs=in_specs,
        out_specs=pl.BlockSpec((tile_b, out_padded), lambda i: (i, 0)),
        compiler_params=pltpu.CompilerParams(
            dimension_semantics=("parallel",)),
        cost_estimate=pl.CostEstimate(
            flops=flops, transcendentals=0, bytes_accessed=bytes_accessed),
    )(x, *flat_params)
    return out, B_pad


# ------------------------------ Module wrapper ------------------------------

class VaeDecoder:
    """JAX/Pallas port of the PyTorch VaeDecoder."""

    def __init__(self, x_dim=28 * 28, hidden_size=256, z_dim=10,
                 extraDecFC_dim=64, isExtraLayer=False, key=None,
                 dtype=jnp.float32, tile_b=_DEFAULT_TILE_B):
        self.x_dim = x_dim
        self.hidden_size = hidden_size
        self.z_dim = z_dim
        self.extraDecFC_dim = extraDecFC_dim
        self.isExtraLayer = isExtraLayer
        self.dtype = dtype
        self.tile_b = tile_b
        # Lane-dense padded output width (e.g. 784 -> 896, 64 -> 128).
        self.x_dim_padded = _round_up(x_dim, _LANE)

        if key is None:
            key = jax.random.PRNGKey(0)

        def linear_init(k, fan_in, fan_out, pad_out=None):
            # torch.nn.Linear default init: U(-1/sqrt(fan_in), 1/sqrt(fan_in))
            kw, kb = jax.random.split(k)
            bound = 1.0 / (fan_in ** 0.5)
            w = jax.random.uniform(kw, (fan_in, fan_out), jnp.float32,
                                   minval=-bound, maxval=bound)
            b = jax.random.uniform(kb, (1, fan_out), jnp.float32,
                                   minval=-bound, maxval=bound)
            if pad_out is not None and pad_out != fan_out:
                w = jnp.pad(w, ((0, 0), (0, pad_out - fan_out)))
                b = jnp.pad(b, ((0, 0), (0, pad_out - fan_out)))
            return w.astype(dtype), b.astype(dtype)

        k1, k2, k3, k4, k5 = jax.random.split(key, 5)
        # self.decoder params (final layer padded to a 128-multiple)
        self.dec_w1, self.dec_b1 = linear_init(k1, z_dim, hidden_size)
        self.dec_w2, self.dec_b2 = linear_init(k2, hidden_size, x_dim,
                                               pad_out=self.x_dim_padded)
        # self.longDecoder params
        self.long_w1, self.long_b1 = linear_init(k3, z_dim, hidden_size)
        self.long_w2, self.long_b2 = linear_init(k4, hidden_size, extraDecFC_dim)
        self.long_w3, self.long_b3 = linear_init(k5, extraDecFC_dim, x_dim,
                                                 pad_out=self.x_dim_padded)

    def _layers(self):
        if self.isExtraLayer:
            return [(self.long_w1, self.long_b1),
                    (self.long_w2, self.long_b2),
                    (self.long_w3, self.long_b3)]
        return [(self.dec_w1, self.dec_b1),
                (self.dec_w2, self.dec_b2)]

    def __call__(self, x):
        B = x.shape[0]
        x = x.astype(self.dtype)
        out, _ = _fused_mlp(x, self._layers(), self.x_dim_padded,
                            tile_b=self.tile_b)
        # Strip batch and lane padding.
        return out[:B, :self.x_dim]

    # pure-JAX reference (for correctness checking only)
    def reference(self, x):
        h = jnp.asarray(x, jnp.float32)
        for w, b in self._layers()[:-1]:
            h = jnp.maximum(h @ w.astype(jnp.float32) + b.astype(jnp.float32), 0.0)
        w, b = self._layers()[-1]
        y = h @ w.astype(jnp.float32) + b.astype(jnp.float32)
        return y[:, :self.x_dim]


# ---------------------------------- main ------------------------------------

if __name__ == "__main__":
    key = jax.random.PRNGKey(0)
    k_params, k_z = jax.random.split(key)

    # small shapes consistent with the module's forward (latent z -> reconstruction)
    batch, z_dim, hidden, x_dim, extra = 8, 10, 32, 64, 16
    z = jax.random.normal(k_z, (batch, z_dim), jnp.float32)

    # default path (isExtraLayer=False): Linear -> ReLU -> Linear
    dec = VaeDecoder(x_dim=x_dim, hidden_size=hidden, z_dim=z_dim,
                     extraDecFC_dim=extra, isExtraLayer=False, key=k_params)
    out = jax.block_until_ready(dec(z))
    assert out.shape == (batch, x_dim)
    ref = dec.reference(z)
    assert jnp.allclose(out, ref, atol=1e-5, rtol=1e-5), "decoder mismatch"

    # extra-layer path: Linear -> ReLU -> Linear -> ReLU -> Linear
    dec_long = VaeDecoder(x_dim=x_dim, hidden_size=hidden, z_dim=z_dim,
                          extraDecFC_dim=extra, isExtraLayer=True, key=k_params)
    out_long = jax.block_until_ready(dec_long(z))
    assert out_long.shape == (batch, x_dim)
    ref_long = dec_long.reference(z)
    assert jnp.allclose(out_long, ref_long, atol=1e-5, rtol=1e-5), "longDecoder mismatch"

    # bf16 params/activations (memory-bound win on v6e/v7x); f32 MXU accumulation.
    dec_bf16 = VaeDecoder(x_dim=x_dim, hidden_size=hidden, z_dim=z_dim,
                          extraDecFC_dim=extra, isExtraLayer=False,
                          key=k_params, dtype=jnp.bfloat16)
    out_bf16 = jax.block_until_ready(dec_bf16(z))
    ref_bf16 = dec_bf16.reference(z.astype(jnp.bfloat16))
    assert out_bf16.shape == (batch, x_dim)
    assert jnp.allclose(out_bf16.astype(jnp.float32), ref_bf16,
                        atol=5e-2, rtol=5e-2), "bf16 decoder mismatch"

    print("KERNEL_OK")
</pallas_src>

<mosaic_0001>
module attributes {stable_mosaic.version = 11 : i64} {
  func.func @_decoder_kernel(%arg0: i32, %arg1: memref<8x10xf32, #tpu.memory_space<vmem>>, %arg2: memref<10x32xf32, #tpu.memory_space<vmem>>, %arg3: memref<1x32xf32, #tpu.memory_space<vmem>>, %arg4: memref<32x128xf32, #tpu.memory_space<vmem>>, %arg5: memref<1x128xf32, #tpu.memory_space<vmem>>, %arg6: memref<8x128xf32, #tpu.memory_space<vmem>>) attributes {dimension_semantics = [#tpu.dimension_semantics<parallel>], iteration_bounds = array<i64: 1>, scalar_prefetch = 0 : i64, scratch_operands = 0 : i64, tpu.core_type = #tpu.core_type<tc>, window_params = [{transform_indices = @transform_0, window_bounds = array<i64: 8, 10>}, {pipeline_mode = #tpu.pipeline_mode<synchronous>, transform_indices = @transform_1, window_bounds = array<i64: 10, 32>}, {pipeline_mode = #tpu.pipeline_mode<synchronous>, transform_indices = @transform_2, window_bounds = array<i64: 1, 32>}, {pipeline_mode = #tpu.pipeline_mode<synchronous>, transform_indices = @transform_3, window_bounds = array<i64: 32, 128>}, {pipeline_mode = #tpu.pipeline_mode<synchronous>, transform_indices = @transform_4, window_bounds = array<i64: 1, 128>}, {transform_indices = @transform_5, window_bounds = array<i64: 8, 128>}]} {
    %c0 = arith.constant 0 : index
    %c0_0 = arith.constant 0 : index
    %0 = vector.load %arg1[%c0, %c0_0] : memref<8x10xf32, #tpu.memory_space<vmem>>, vector<8x10xf32>
    %c0_1 = arith.constant 0 : index
    %c0_2 = arith.constant 0 : index
    %1 = vector.load %arg2[%c0_1, %c0_2] : memref<10x32xf32, #tpu.memory_space<vmem>>, vector<10x32xf32>
    %cst = arith.constant dense<0.000000e+00> : vector<8x32xf32>
    %2 = tpu.matmul %0, %1, %cst {dimension_numbers = #tpu.dot_dimension_numbers<[1], [0], [0], [1], [0, 0, 1, 1], [], []>} : vector<8x10xf32>, vector<10x32xf32>, vector<8x32xf32> -> vector<8x32xf32>
    %c0_3 = arith.constant 0 : index
    %c0_4 = arith.constant 0 : index
    %3 = vector.load %arg3[%c0_3, %c0_4] : memref<1x32xf32, #tpu.memory_space<vmem>>, vector<1x32xf32>
    %4 = vector.broadcast %3 : vector<1x32xf32> to vector<8x32xf32>
    %5 = arith.addf %2, %4 : vector<8x32xf32>
    %cst_5 = arith.constant 0.000000e+00 : f32
    %6 = vector.broadcast %cst_5 : f32 to vector<8x32xf32>
    %7 = arith.maximumf %5, %6 : vector<8x32xf32>
    %c0_6 = arith.constant 0 : index
    %c0_7 = arith.constant 0 : index
    %8 = vector.load %arg4[%c0_6, %c0_7] : memref<32x128xf32, #tpu.memory_space<vmem>>, vector<32x128xf32>
    %cst_8 = arith.constant dense<0.000000e+00> : vector<8x128xf32>
    %9 = tpu.matmul %7, %8, %cst_8 {dimension_numbers = #tpu.dot_dimension_numbers<[1], [0], [0], [1], [0, 0, 1, 1], [], []>} : vector<8x32xf32>, vector<32x128xf32>, vector<8x128xf32> -> vector<8x128xf32>
    %c0_9 = arith.constant 0 : index
    %c0_10 = arith.constant 0 : index
    %10 = vector.load %arg5[%c0_9, %c0_10] : memref<1x128xf32, #tpu.memory_space<vmem>>, vector<1x128xf32>
    %11 = vector.broadcast %10 : vector<1x128xf32> to vector<8x128xf32>
    %12 = arith.addf %9, %11 : vector<8x128xf32>
    %c0_11 = arith.constant 0 : index
    %c0_12 = arith.constant 0 : index
    %13 = vector.load %arg6[%c0_11, %c0_12] : memref<8x128xf32, #tpu.memory_space<vmem>>, vector<8x128xf32>
    tpu.vector_store %arg6[%c0_11, %c0_12], %12 {strides = array<i32>} : memref<8x128xf32, #tpu.memory_space<vmem>>, vector<8x128xf32>,
    return
  }
  func.func @transform_0(%arg0: i32) -> (i32, i32) {
    %c0_i32 = arith.constant 0 : i32
    %c0_i32_0 = arith.constant 0 : i32
    return %arg0, %c0_i32 : i32, i32
  }
  func.func @transform_1(%arg0: i32) -> (i32, i32) {
    %c0_i32 = arith.constant 0 : i32
    %c0_i32_0 = arith.constant 0 : i32
    %c0_i32_1 = arith.constant 0 : i32
    return %c0_i32, %c0_i32_0 : i32, i32
  }
  func.func @transform_2(%arg0: i32) -> (i32, i32) {
    %c0_i32 = arith.constant 0 : i32
    %c0_i32_0 = arith.constant 0 : i32
    %c0_i32_1 = arith.constant 0 : i32
    return %c0_i32, %c0_i32_0 : i32, i32
  }
  func.func @transform_3(%arg0: i32) -> (i32, i32) {
    %c0_i32 = arith.constant 0 : i32
    %c0_i32_0 = arith.constant 0 : i32
    %c0_i32_1 = arith.constant 0 : i32
    return %c0_i32, %c0_i32_0 : i32, i32
  }
  func.func @transform_4(%arg0: i32) -> (i32, i32) {
    %c0_i32 = arith.constant 0 : i32
    %c0_i32_0 = arith.constant 0 : i32
    %c0_i32_1 = arith.constant 0 : i32
    return %c0_i32, %c0_i32_0 : i32, i32
  }
  func.func @transform_5(%arg0: i32) -> (i32, i32) {
    %c0_i32 = arith.constant 0 : i32
    %c0_i32_0 = arith.constant 0 : i32
    return %arg0, %c0_i32 : i32, i32
  }
}

</mosaic_0001>

<llo_original>
// kernel: tpu_custom_call.1
$region0: #{tpu_custom_call.1}
  #allocation0 [shape = 'u32[]', space=smem, size = 0x4, offset = 0x4, fixed_abs, tag = 'smem constant byte address 0x4 - core index']
  #allocation1 [shape = 'u32[72,128]{1,0:T(1,128)}', space=vmem, size = 0x9000, scoped, tag = 'internal scratch']
  %s0 = inlined_call_operand.hbm [shape: f32[8,10], index: 0, kind: input, shape index: {}]
  %s1 = inlined_call_operand.hbm [shape: f32[10,32], index: 1, kind: input, shape index: {}]
  %s2 = inlined_call_operand.vmem [shape: f32[1,32], index: 2, kind: input, shape index: {}]
  %s3 = inlined_call_operand.hbm [shape: f32[32,128], index: 3, kind: input, shape index: {}]
  %s4 = inlined_call_operand.vmem [shape: f32[1,128], index: 4, kind: input, shape index: {}]
  %s5 = inlined_call_operand.hbm [shape: f32[8,128], index: 5, kind: output, shape index: {}]
  %s6 = sld [smem:[#allocation0]]
  $region42: #{tpu_custom_call.1} parent=0
    _
  %s8 = ssub.s32 1, %s6
  %s9 = scalar_select 0, %s8, %s6
  $region1: #{tpu_custom_call.1} parent=0
    #allocation2 [shape = 'u8[4096]{0}', space=vmem, size = 0x1000, scoped, tag = 'input window, operand 0, single buffered']
    #allocation3 [shape = 's32[1]{0}', space=sflag, size = 0x4, scoped, tag = 'scoped memory for tpu_custom_call.1']
    #allocation4 [shape = 's32[1]{0}', space=sflag, size = 0x4, scoped, tag = 'scoped memory for tpu_custom_call.1']
    #allocation5 [shape = 'u8[8192]{0}', space=vmem, size = 0x2000, scoped, tag = 'input window, operand 1, single buffered']
    #allocation6 [shape = 's32[1]{0}', space=sflag, size = 0x4, scoped, tag = 'scoped memory for tpu_custom_call.1']
    #allocation7 [shape = 'u8[16384]{0}', space=vmem, size = 0x4000, scoped, tag = 'input window, operand 3, single buffered']
    #allocation8 [shape = 'u8[4096]{0}', space=vmem, size = 0x1000, scoped, tag = 'output window, operand 0, single buffered']
    %10 = vsyncpa [#allocation3], 0
    %11 = vsyncpa [#allocation6], 0
    %12 = vsyncpa [#allocation4], 0
    // Predicated region
    $region2: #{tpu_custom_call.1} parent=1 // pred_check
      _
    $region3: #{tpu_custom_call.1} parent=1 // pred_check_branch
      %14 = sbr.rel (0) target = $region5
    $region4: #{tpu_custom_call.1} parent=1 // pred_region
      %16 = vsyncadd [#allocation3], 0
      %s18 = sshll.u32 %s0, 4
      %s19 = int_to_ptr.hbm [resolvable:$true] %s18
      %s20 = sshll.u32 [#allocation2], 4
      %s21 = int_to_ptr.vmem [resolvable:$true] %s20
      %23 = dma.hbm_to_vmem [thread:$0]  %s19, 128, %s21, [#allocation3]
    $region5: #{tpu_custom_call.1} parent=1 // pred_fallthru
      _
    // Predicated region
    $region6: #{tpu_custom_call.1} parent=1 // pred_check
      _
    $region7: #{tpu_custom_call.1} parent=1 // pred_check_branch
      %25 = sbr.rel (0) target = $region9
    $region8: #{tpu_custom_call.1} parent=1 // pred_region
      %27 = vsyncadd [#allocation6], 0
      %s28 = sshll.u32 %s1, 4
      %s29 = int_to_ptr.hbm [resolvable:$true] %s28
      %s30 = sshll.u32 [#allocation5], 4
      %s31 = int_to_ptr.vmem [resolvable:$true] %s30
      %36 = dma.hbm_to_vmem [thread:$0]  %s29, 256, %s31, [#allocation6], 128, 128, 8
    $region9: #{tpu_custom_call.1} parent=1 // pred_fallthru
      _
    // Predicated region
    $region10: #{tpu_custom_call.1} parent=1 // pred_check
      _
    $region11: #{tpu_custom_call.1} parent=1 // pred_check_branch
      %38 = sbr.rel (0) target = $region13
    $region12: #{tpu_custom_call.1} parent=1 // pred_region
      _
    $region13: #{tpu_custom_call.1} parent=1 // pred_fallthru
      _
    // Predicated region
    $region14: #{tpu_custom_call.1} parent=1 // pred_check
      _
    $region15: #{tpu_custom_call.1} parent=1 // pred_check_branch
      %40 = sbr.rel (0) target = $region17
    $region16: #{tpu_custom_call.1} parent=1 // pred_region
      %42 = vsyncadd [#allocation6], 0
      %s43 = sshll.u32 %s3, 4
      %s44 = int_to_ptr.hbm [resolvable:$true] %s43
      %s45 = sshll.u32 [#allocation7], 4
      %s46 = int_to_ptr.vmem [resolvable:$true] %s45
      %51 = dma.hbm_to_vmem [thread:$0]  %s44, 512, %s46, [#allocation6], 128, 128, 8
    $region17: #{tpu_custom_call.1} parent=1 // pred_fallthru
      _
    // Predicated region
    $region18: #{tpu_custom_call.1} parent=1 // pred_check
      _
    $region19: #{tpu_custom_call.1} parent=1 // pred_check_branch
      %53 = sbr.rel (0) target = $region21
    $region20: #{tpu_custom_call.1} parent=1 // pred_region
      _
    $region21: #{tpu_custom_call.1} parent=1 // pred_fallthru
      _
    // Predicated region
    $region22: #{tpu_custom_call.1} parent=1 // pred_check
      _
    $region23: #{tpu_custom_call.1} parent=1 // pred_check_branch
      %55 = sbr.rel (0) target = $region25
    $region24: #{tpu_custom_call.1} parent=1 // pred_region
      %57 = dma.done [#allocation3], 128
    $region25: #{tpu_custom_call.1} parent=1 // pred_fallthru
      _
    // Predicated region
    $region26: #{tpu_custom_call.1} parent=1 // pred_check
      _
    $region27: #{tpu_custom_call.1} parent=1 // pred_check_branch
      %59 = sbr.rel (0) target = $region29
    $region28: #{tpu_custom_call.1} parent=1 // pred_region
      %61 = dma.done [#allocation6], 256
    $region29: #{tpu_custom_call.1} parent=1 // pred_fallthru
      _
    // Predicated region
    $region30: #{tpu_custom_call.1} parent=1 // pred_check
      _
    $region31: #{tpu_custom_call.1} parent=1 // pred_check_branch
      %63 = sbr.rel (0) target = $region33
    $region32: #{tpu_custom_call.1} parent=1 // pred_region
      %65 = dma.done [#allocation6], 512
    $region33: #{tpu_custom_call.1} parent=1 // pred_fallthru
      _
    %v66 = vld [vmem:[#allocation2] sm:$0xff]
    %v67 = vld [vmem:[#allocation5] sm:$0xff]
    %v68 = vld [vmem:[#allocation5 + $0x8] sm:$0x3]
    %v69 = vld [vmem:[%s2] sm:$0x1]
    %v71 = vperm.slane %v69, 0
    %vm73 = vcmask 80896
    %v75 = vsel %vm73, %v66, 0
    %vm77 = vcmask 1041408
    %v79 = vsel %vm77, %v68, 0
    %81 = vmatpush.msra.mxu0 0.0
    %82 = vmatpush.msra.mxu0 0.0
    %83 = vmatpush.msra.mxu0 0.0
    %84 = vmatpush.msra.mxu0 0.0
    %85 = vmatpush.msra.mxu0 0.0
    %86 = vmatpush.msra.mxu0 0.0
    %87 = vmatpush.msra.mxu0 0.0
    %88 = vmatpush.msra.mxu0 0.0
    %89 = vmatpush.msra.mxu0 0.0
    %90 = vmatpush.msra.mxu0 0.0
    %91 = vmatpush.msra.mxu0 0.0
    %92 = vmatpush.msra.mxu0 0.0
    %93 = vmatpush.msra.mxu0 0.0
    %94 = vmatpush.msra.mxu0 0.0
    %95 = vmatpush.msra.mxu0 %v79
    %96 = vmatpush.msra.mxu0 %v67
    %97 = vmatmul.f32.gmra.mxu0 %v75
    %v98 = vpop.f32.mrf.mxu0
    %v99 = vadd.f32 %v71, %v98
    %100 = vdwg.mxu0
    %v101 = vmax.f32 %v99, 0.0
    %v102 = vld [vmem:[#allocation7] sm:$0xff]
    %v103 = vld [vmem:[#allocation7 + $0x8] sm:$0xff]
    %v104 = vld [vmem:[#allocation7 + $0x10] sm:$0xff]
    %v105 = vld [vmem:[#allocation7 + $0x18] sm:$0xff]
    %v106 = vld [vmem:[%s4] sm:$0x1]
    %v108 = vperm.slane %v106, 0
    %vm110 = vcmask 261120
    %v112 = vsel %vm110, %v101, 0
    %114 = vmatpush.msra.mxu0 0.0
    %115 = vmatpush.msra.mxu0 0.0
    %116 = vmatpush.msra.mxu0 0.0
    %117 = vmatpush.msra.mxu0 0.0
    %118 = vmatpush.msra.mxu0 0.0
    %119 = vmatpush.msra.mxu0 0.0
    %120 = vmatpush.msra.mxu0 0.0
    %121 = vmatpush.msra.mxu0 0.0
    %122 = vmatpush.msra.mxu0 0.0
    %123 = vmatpush.msra.mxu0 0.0
    %124 = vmatpush.msra.mxu0 0.0
    %125 = vmatpush.msra.mxu0 0.0
    %126 = vmatpush.msra.mxu0 %v105
    %127 = vmatpush.msra.mxu0 %v104
    %128 = vmatpush.msra.mxu0 %v103
    %129 = vmatpush.msra.mxu0 %v102
    %130 = vmatmul.f32.gmra.mxu0 %v112
    %v131 = vpop.f32.mrf.mxu0
    %v132 = vadd.f32 %v108, %v131
    %133 = vdwg.mxu0
    %134 = vst [vmem:[#allocation8] sm:$0xff] %v132
    // Predicated region
    $region34: #{tpu_custom_call.1} parent=1 // pred_check
      _
    $region35: #{tpu_custom_call.1} parent=1 // pred_check_branch
      %136 = sbr.rel (0) target = $region37
    $region36: #{tpu_custom_call.1} parent=1 // pred_region
      %138 = vsyncadd [#allocation4], 0
      %s140 = sshll.u32 [#allocation8], 4
      %s141 = int_to_ptr.vmem [resolvable:$true] %s140
      %s142 = sshll.u32 %s5, 4
      %s143 = int_to_ptr.hbm [resolvable:$true] %s142
      %145 = dma.vmem_to_hbm [thread:$0]  %s141, 128, %s143, [#allocation4]
    $region37: #{tpu_custom_call.1} parent=1 // pred_fallthru
      _
    // Predicated region
    $region38: #{tpu_custom_call.1} parent=1 // pred_check
      _
    $region39: #{tpu_custom_call.1} parent=1 // pred_check_branch
      %147 = sbr.rel (0) target = $region41
    $region40: #{tpu_custom_call.1} parent=1 // pred_region
      %149 = dma.done [#allocation4], 128
    $region41: #{tpu_custom_call.1} parent=1 // pred_fallthru
      _
    %150 = vsyncpa [#allocation3], 1
    %151 = vsyncpa [#allocation6], 1
    %152 = vsyncpa [#allocation4], 1

</llo_original>
